<compile_context>
chip_gen: v7x
topology: tpu7x:2x2x1
jax: 0.10.0
libtpu: 0.0.40
codegen_flags: <defaults>
</compile_context>

<pallas_src>
import functools

import jax
import jax.numpy as jnp
from jax import lax
from jax.experimental import pallas as pl
from jax.experimental.pallas import tpu as pltpu


def _round_up(x: int, m: int) -> int:
    return ((x + m - 1) // m) * m


def _default_tiles():
    """Per-generation (tm, th, multi_tc) defaults. Conservative if unknown."""
    try:
        kind = jax.devices()[0].device_kind.lower()
    except Exception:  # pragma: no cover
        kind = ""
    if "v7" in kind:
        # 64 MiB VMEM per TC, 2 TCs/chip: cap the row tile, keep th modest.
        return 512, 256, True
    if "v6" in kind:
        # 128 MiB VMEM, 918 TF/s vs ~1.35 TB/s -> need tm >= ~768 to clear the
        # weight-streaming roofline.
        return 1024, 256, False
    if "v5" in kind:
        # v5e: 197 TF/s vs ~0.82 TB/s -> tm >= ~384 suffices.
        return 512, 256, False
    return 512, 256, False


def _vmem_limit_bytes(tm, th, dim_p, compute_itemsize, out_itemsize, kt):
    """Scoped-VMEM request derived from the pipeline's actual tile footprint."""
    wbuf = 1 if kt == 1 else 2                       # grid-invariant weights single-buffer
    b = 2 * tm * dim_p * compute_itemsize            # x tile, double-buffered
    b += wbuf * (2 * th) * dim_p * compute_itemsize  # packed W1/W2 tile
    b += wbuf * dim_p * th * compute_itemsize        # W3 tile
    b += 2 * tm * dim_p * out_itemsize               # output tile, double-buffered
    b += tm * dim_p * 4                              # f32 accumulator scratch
    b += tm * (2 * th) * 4 + 2 * tm * th * 4         # h12 / gated intermediates
    return min(int(b * 1.2) + (4 << 20), 110 << 20)


def swiglu_kernel(x_ref, w12_ref, w3_ref, o_ref, acc_ref, *, th):
    # x_ref:   (tm, dim_p)        row tile of the input (compute dtype)
    # w12_ref: (2*th, dim_p)      packed [W1 tile ; W2 tile] (native (out, in) layout)
    # w3_ref:  (dim_p, th)        hidden tile of W3 (native (dim, hidden) layout)
    # o_ref:   (tm, dim_p)        row tile of the output
    # acc_ref: (tm, dim_p) f32    accumulator over the hidden grid axis
    k = pl.program_id(1)

    x = x_ref[...]
    # Contract the last axis of both operands (== x @ W^T): weights stay in their native
    # PyTorch (out_features, in_features) layout; f32 accumulation on the MXU.
    dn = (((1,), (1,)), ((), ()))
    h12 = lax.dot_general(x, w12_ref[...], dn, preferred_element_type=jnp.float32)
    h1 = h12[:, :th]          # static, lane-aligned slices (th % 128 == 0)
    h2 = h12[:, th:]

    # SiLU(h1) * h2 in f32 (VPU + EUP work, hidden under the MXU).
    gated = (h1 * jax.nn.sigmoid(h1)) * h2

    # Partial contribution of this hidden tile: gated @ W3^T.
    partial = lax.dot_general(gated.astype(x.dtype), w3_ref[...], dn,
                              preferred_element_type=jnp.float32)

    @pl.when(k == 0)
    def _first():
        acc_ref[...] = partial          # no zero-fill + read on the first step

    @pl.when(k > 0)
    def _accumulate():
        acc_ref[...] += partial

    @pl.when(k == pl.num_programs(1) - 1)
    def _finalize():
        o_ref[...] = acc_ref[...].astype(o_ref.dtype)


def prepack_swiglu_weights(w1, w2, w3, *, th, dim_p, hidden_p, compute_dtype):
    """Pad + cast weights and interleave W1/W2 per hidden tile (do this once at init)."""
    hidden, dim = w1.shape
    w1p = jnp.pad(w1.astype(compute_dtype), ((0, hidden_p - hidden), (0, dim_p - dim)))
    w2p = jnp.pad(w2.astype(compute_dtype), ((0, hidden_p - hidden), (0, dim_p - dim)))
    w3p = jnp.pad(w3.astype(compute_dtype), ((0, dim_p - dim), (0, hidden_p - hidden)))
    kt = hidden_p // th
    # Block k of the packed array = [W1 rows k*th:(k+1)*th ; W2 rows k*th:(k+1)*th].
    w12 = jnp.concatenate(
        [w1p.reshape(kt, th, dim_p), w2p.reshape(kt, th, dim_p)], axis=1
    ).reshape(2 * hidden_p, dim_p)
    return w12, w3p


def swiglu(x, w1, w2, w3, *, tm=None, th=None, compute_dtype=jnp.bfloat16,
           out_dtype=None):
    """Fused SwiGLU forward.

    x:  [B, S, dim]
    w1, w2: [hidden, dim]   (PyTorch nn.Linear weight layout, hidden = 8*dim//3)
    w3: [dim, hidden]
    """
    B, S, dim = x.shape
    hidden = w1.shape[0]
    assert w1.shape == (hidden, dim)
    assert w2.shape == (hidden, dim)
    assert w3.shape == (dim, hidden)

    if out_dtype is None:
        out_dtype = x.dtype
    if compute_dtype is None:
        compute_dtype = x.dtype

    tm_def, th_def, multi_tc = _default_tiles()
    tm = tm_def if tm is None else max(8, _round_up(tm, 8))
    th = th_def if th is None else max(128, _round_up(th, 128))

    M = B * S
    # Shrink tiles for small problems; keep (8, 128) alignment.
    tm_eff = min(tm, _round_up(M, 8))
    th_eff = min(th, _round_up(hidden, 128))
    dim_p = _round_up(dim, 128)            # lane-dense feature dim
    hidden_p = _round_up(hidden, th_eff)
    M_p = _round_up(M, tm_eff)

    # Keep both TensorCores busy on megacore parts when M is large enough to split.
    if multi_tc and M_p // tm_eff < 2 and M_p >= 512:
        tm_eff = max(256, _round_up(M_p // 2, 256))
        M_p = _round_up(M, tm_eff)

    kt = hidden_p // th_eff
    grid = (M_p // tm_eff, kt)

    # --- activations: only pad / cast when actually needed (avoid extra HBM passes) ---
    need_pad = (dim_p != dim) or (M_p != M)
    x2d = x.reshape(M, dim)
    if x2d.dtype != compute_dtype:
        x2d = x2d.astype(compute_dtype)
    if need_pad:
        x2d = jnp.pad(x2d, ((0, M_p - M), (0, dim_p - dim)))

    # --- weights: pad + cast + pack per hidden tile (ideally hoisted to init) ---
    w12, w3p = prepack_swiglu_weights(
        w1, w2, w3, th=th_eff, dim_p=dim_p, hidden_p=hidden_p,
        compute_dtype=compute_dtype)

    def w_spec(block_shape, index_map):
        if kt == 1:
            # Weight block never changes across the grid -> single-buffer it.
            return pl.BlockSpec(block_shape, index_map, pipeline_mode=pl.Buffered(1))
        return pl.BlockSpec(block_shape, index_map)

    vmem_limit = _vmem_limit_bytes(
        tm_eff, th_eff, dim_p,
        jnp.dtype(compute_dtype).itemsize, jnp.dtype(out_dtype).itemsize, kt)

    out2d = pl.pallas_call(
        functools.partial(swiglu_kernel, th=th_eff),
        out_shape=jax.ShapeDtypeStruct((M_p, dim_p), out_dtype),
        grid_spec=pltpu.PrefetchScalarGridSpec(
            num_scalar_prefetch=0,
            grid=grid,
            in_specs=[
                pl.BlockSpec((tm_eff, dim_p), lambda i, k: (i, 0)),      # x rows
                w_spec((2 * th_eff, dim_p), lambda i, k: (k, 0)),        # packed W1/W2
                w_spec((dim_p, th_eff), lambda i, k: (0, k)),            # W3
            ],
            out_specs=pl.BlockSpec((tm_eff, dim_p), lambda i, k: (i, 0)),
            scratch_shapes=[pltpu.VMEM((tm_eff, dim_p), jnp.float32)],
        ),
        compiler_params=pltpu.CompilerParams(
            dimension_semantics=("parallel", "arbitrary"),
            vmem_limit_bytes=vmem_limit),
    )(x2d, w12, w3p)

    out = out2d[:M, :dim] if need_pad else out2d
    return out.reshape(B, S, dim)


def swiglu_ref(x, w1, w2, w3):
    hp = functools.partial(jnp.einsum, precision=lax.Precision.HIGHEST)
    h1 = hp("bsd,hd->bsh", x, w1)
    h2 = hp("bsd,hd->bsh", x, w2)
    g = (h1 * jax.nn.sigmoid(h1)) * h2
    return hp("bsh,dh->bsd", g, w3)


if __name__ == "__main__":
    # Small shapes consistent with the module: dim=48 -> hidden = 8*48//3 = 128.
    dim = 48
    hidden = 8 * dim // 3
    B, S = 2, 8

    key = jax.random.PRNGKey(0)
    kx, k1, k2, k3 = jax.random.split(key, 4)

    x = jax.random.normal(kx, (B, S, dim), dtype=jnp.float32)
    # Deterministic parameter init (uniform, roughly PyTorch Linear scale).
    w1 = jax.random.uniform(k1, (hidden, dim), minval=-1.0, maxval=1.0) / jnp.sqrt(dim)
    w2 = jax.random.uniform(k2, (hidden, dim), minval=-1.0, maxval=1.0) / jnp.sqrt(dim)
    w3 = jax.random.uniform(k3, (dim, hidden), minval=-1.0, maxval=1.0) / jnp.sqrt(hidden)

    ref = swiglu_ref(x, w1, w2, w3)

    # Default path: bf16 MXU operands, f32 accumulation + f32 gating -> loose check.
    out_bf16 = swiglu(x, w1, w2, w3)
    jax.block_until_ready(out_bf16)
    assert out_bf16.shape == (B, S, dim)
    assert jnp.allclose(out_bf16, ref, atol=1e-1, rtol=1e-1)

    # f32 compute path: tight check against the HIGHEST-precision reference.
    out_f32 = swiglu(x, w1, w2, w3, compute_dtype=jnp.float32)
    jax.block_until_ready(out_f32)
    assert out_f32.shape == (B, S, dim)
    assert jnp.allclose(out_f32, ref, atol=1e-3, rtol=1e-3)

    print("KERNEL_OK")
</pallas_src>

<mosaic_0001>
module attributes {stable_mosaic.version = 11 : i64} {
  func.func @swiglu_kernel(%arg0: i32, %arg1: i32, %arg2: memref<16x128xbf16, #tpu.memory_space<vmem>>, %arg3: memref<256x128xbf16, #tpu.memory_space<vmem>>, %arg4: memref<128x128xbf16, #tpu.memory_space<vmem>>, %arg5: memref<16x128xf32, #tpu.memory_space<vmem>>, %arg6: memref<16x128xf32, #tpu.memory_space<vmem>>) attributes {dimension_semantics = [#tpu.dimension_semantics<parallel>, #tpu.dimension_semantics<arbitrary>], iteration_bounds = array<i64: 1, 1>, scalar_prefetch = 0 : i64, scratch_operands = 1 : i64, tpu.core_type = #tpu.core_type<tc>, window_params = [{transform_indices = @transform_0, window_bounds = array<i64: 16, 128>}, {pipeline_mode = #tpu.pipeline_mode<synchronous>, transform_indices = @transform_1, window_bounds = array<i64: 256, 128>}, {pipeline_mode = #tpu.pipeline_mode<synchronous>, transform_indices = @transform_2, window_bounds = array<i64: 128, 128>}, {transform_indices = @transform_3, window_bounds = array<i64: 16, 128>}]} {
    %c0 = arith.constant 0 : index
    %c0_0 = arith.constant 0 : index
    %0 = vector.load %arg2[%c0, %c0_0] : memref<16x128xbf16, #tpu.memory_space<vmem>>, vector<16x128xbf16>
    %c0_1 = arith.constant 0 : index
    %c0_2 = arith.constant 0 : index
    %1 = vector.load %arg3[%c0_1, %c0_2] : memref<256x128xbf16, #tpu.memory_space<vmem>>, vector<256x128xbf16>
    %cst = arith.constant dense<0.000000e+00> : vector<16x256xf32>
    %2 = tpu.matmul %0, %1, %cst {dimension_numbers = #tpu.dot_dimension_numbers<[1], [1], [0], [0], [0, 0, 1, 0], [], []>} : vector<16x128xbf16>, vector<256x128xbf16>, vector<16x256xf32> -> vector<16x256xf32>
    %3 = vector.extract_strided_slice %2 {offsets = [0, 0], sizes = [16, 128], strides = [1, 1]} : vector<16x256xf32> to vector<16x128xf32>
    %4 = vector.extract_strided_slice %2 {offsets = [0, 128], sizes = [16, 128], strides = [1, 1]} : vector<16x256xf32> to vector<16x128xf32>
    %5 = arith.negf %3 : vector<16x128xf32>
    %6 = math.exp %5 : vector<16x128xf32>
    %cst_3 = arith.constant 1.000000e+00 : f32
    %7 = vector.broadcast %cst_3 : f32 to vector<16x128xf32>
    %8 = arith.addf %7, %6 : vector<16x128xf32>
    %9 = arith.divf %7, %8 : vector<16x128xf32>
    %10 = arith.mulf %3, %9 : vector<16x128xf32>
    %11 = arith.mulf %10, %4 : vector<16x128xf32>
    %12 = arith.truncf %11 : vector<16x128xf32> to vector<16x128xbf16>
    %c0_4 = arith.constant 0 : index
    %c0_5 = arith.constant 0 : index
    %13 = vector.load %arg4[%c0_4, %c0_5] : memref<128x128xbf16, #tpu.memory_space<vmem>>, vector<128x128xbf16>
    %cst_6 = arith.constant dense<0.000000e+00> : vector<16x128xf32>
    %14 = tpu.matmul %12, %13, %cst_6 {dimension_numbers = #tpu.dot_dimension_numbers<[1], [1], [0], [0], [0, 0, 1, 0], [], []>} : vector<16x128xbf16>, vector<128x128xbf16>, vector<16x128xf32> -> vector<16x128xf32>
    %c0_i32 = arith.constant 0 : i32
    %15 = arith.cmpi eq, %arg1, %c0_i32 : i32
    %16 = arith.extui %15 : i1 to i32
    %c0_i32_7 = arith.constant 0 : i32
    %17 = arith.cmpi ne, %16, %c0_i32_7 : i32
    scf.if %17 {
      %c0_12 = arith.constant 0 : index
      %c0_13 = arith.constant 0 : index
      %24 = vector.load %arg6[%c0_12, %c0_13] : memref<16x128xf32, #tpu.memory_space<vmem>>, vector<16x128xf32>
      tpu.vector_store %arg6[%c0_12, %c0_13], %14 {strides = array<i32>} : memref<16x128xf32, #tpu.memory_space<vmem>>, vector<16x128xf32>,
    } else {
    }
    %c0_i32_8 = arith.constant 0 : i32
    %18 = arith.cmpi sgt, %arg1, %c0_i32_8 : i32
    %19 = arith.extui %18 : i1 to i32
    %c0_i32_9 = arith.constant 0 : i32
    %20 = arith.cmpi ne, %19, %c0_i32_9 : i32
    scf.if %20 {
      %c0_12 = arith.constant 0 : index
      %c0_13 = arith.constant 0 : index
      %24 = vector.load %arg6[%c0_12, %c0_13] : memref<16x128xf32, #tpu.memory_space<vmem>>, vector<16x128xf32>
      %25 = arith.addf %24, %14 : vector<16x128xf32>
      %c0_14 = arith.constant 0 : index
      %c0_15 = arith.constant 0 : index
      %26 = vector.load %arg6[%c0_14, %c0_15] : memref<16x128xf32, #tpu.memory_space<vmem>>, vector<16x128xf32>
      tpu.vector_store %arg6[%c0_14, %c0_15], %25 {strides = array<i32>} : memref<16x128xf32, #tpu.memory_space<vmem>>, vector<16x128xf32>,
    } else {
    }
    %c0_i32_10 = arith.constant 0 : i32
    %21 = arith.cmpi eq, %arg1, %c0_i32_10 : i32
    %22 = arith.extui %21 : i1 to i32
    %c0_i32_11 = arith.constant 0 : i32
    %23 = arith.cmpi ne, %22, %c0_i32_11 : i32
    scf.if %23 {
      %c0_12 = arith.constant 0 : index
      %c0_13 = arith.constant 0 : index
      %24 = vector.load %arg6[%c0_12, %c0_13] : memref<16x128xf32, #tpu.memory_space<vmem>>, vector<16x128xf32>
      %c0_14 = arith.constant 0 : index
      %c0_15 = arith.constant 0 : index
      %25 = vector.load %arg5[%c0_14, %c0_15] : memref<16x128xf32, #tpu.memory_space<vmem>>, vector<16x128xf32>
      tpu.vector_store %arg5[%c0_14, %c0_15], %24 {strides = array<i32>} : memref<16x128xf32, #tpu.memory_space<vmem>>, vector<16x128xf32>,
    } else {
    }
    return
  }
  func.func @transform_0(%arg0: i32, %arg1: i32) -> (i32, i32) {
    %c0_i32 = arith.constant 0 : i32
    %c0_i32_0 = arith.constant 0 : i32
    return %arg0, %c0_i32 : i32, i32
  }
  func.func @transform_1(%arg0: i32, %arg1: i32) -> (i32, i32) {
    %c0_i32 = arith.constant 0 : i32
    %c0_i32_0 = arith.constant 0 : i32
    return %arg1, %c0_i32 : i32, i32
  }
  func.func @transform_2(%arg0: i32, %arg1: i32) -> (i32, i32) {
    %c0_i32 = arith.constant 0 : i32
    %c0_i32_0 = arith.constant 0 : i32
    return %c0_i32, %arg1 : i32, i32
  }
  func.func @transform_3(%arg0: i32, %arg1: i32) -> (i32, i32) {
    %c0_i32 = arith.constant 0 : i32
    %c0_i32_0 = arith.constant 0 : i32
    return %arg0, %c0_i32 : i32, i32
  }
}

</mosaic_0001>

<llo_original>
// kernel: tpu_custom_call.1
$region0: #{tpu_custom_call.1}
  #allocation0 [shape = 'u32[]', space=smem, size = 0x4, offset = 0x4, fixed_abs, tag = 'smem constant byte address 0x4 - core index']
  #allocation1 [shape = 'u32[144,128]{1,0:T(1,128)}', space=vmem, size = 0x12000, scoped, tag = 'internal scratch']
  #allocation2 [shape = 'f32[16,128]{1,0:T(8,128)}', space=vmem, size = 0x2000, scoped, tag = 'scratch operand']
  %s0 = inlined_call_operand.hbm [shape: bf16[16,128], index: 0, kind: input, shape index: {}]
  %s1 = inlined_call_operand.hbm [shape: bf16[256,128], index: 1, kind: input, shape index: {}]
  %s2 = inlined_call_operand.hbm [shape: bf16[128,128], index: 2, kind: input, shape index: {}]
  %s3 = inlined_call_operand.hbm [shape: f32[16,128], index: 3, kind: output, shape index: {}]
  %s4 = sld [smem:[#allocation0]]
  $region46: #{tpu_custom_call.1} parent=0
    _
  %s6 = ssub.s32 1, %s4
  %s7 = scalar_select 0, %s6, %s4
  $region1: #{tpu_custom_call.1} parent=0
    #allocation3 [shape = 'u8[4096]{0}', space=vmem, size = 0x1000, scoped, tag = 'input window, operand 0, single buffered']
    #allocation4 [shape = 's32[1]{0}', space=sflag, size = 0x4, scoped, tag = 'scoped memory for tpu_custom_call.1']
    #allocation5 [shape = 's32[1]{0}', space=sflag, size = 0x4, scoped, tag = 'scoped memory for tpu_custom_call.1']
    #allocation6 [shape = 'u8[65536]{0}', space=vmem, size = 0x10000, scoped, tag = 'input window, operand 1, single buffered']
    #allocation7 [shape = 's32[1]{0}', space=sflag, size = 0x4, scoped, tag = 'scoped memory for tpu_custom_call.1']
    #allocation8 [shape = 'u8[32768]{0}', space=vmem, size = 0x8000, scoped, tag = 'input window, operand 2, single buffered']
    #allocation9 [shape = 'u8[8192]{0}', space=vmem, size = 0x2000, scoped, tag = 'output window, operand 0, single buffered']
    %8 = vsyncpa [#allocation4], 0
    %9 = vsyncpa [#allocation7], 0
    %10 = vsyncpa [#allocation5], 0
    // Predicated region
    $region2: #{tpu_custom_call.1} parent=1 // pred_check
      _
    $region3: #{tpu_custom_call.1} parent=1 // pred_check_branch
      %12 = sbr.rel (0) target = $region5
    $region4: #{tpu_custom_call.1} parent=1 // pred_region
      %s14 = ssub.s32 128, 128
      %15 = vsyncadd [#allocation4], %s14
      %s16 = sshll.u32 [#allocation3], 4
      %s17 = int_to_ptr.vmem [resolvable:$true] %s16
      %22 = dma.hbm_to_vmem [thread:$0]  %s0, 128, %s17, [#allocation4], 64, 64, 4
    $region5: #{tpu_custom_call.1} parent=1 // pred_fallthru
      _
    // Predicated region
    $region6: #{tpu_custom_call.1} parent=1 // pred_check
      _
    $region7: #{tpu_custom_call.1} parent=1 // pred_check_branch
      %24 = sbr.rel (0) target = $region9
    $region8: #{tpu_custom_call.1} parent=1 // pred_region
      %s26 = ssub.s32 2048, 2048
      %27 = vsyncadd [#allocation7], %s26
      %s28 = sshll.u32 [#allocation6], 4
      %s29 = int_to_ptr.vmem [resolvable:$true] %s28
      %34 = dma.hbm_to_vmem [thread:$0]  %s1, 2048, %s29, [#allocation7], 64, 64, 4
    $region9: #{tpu_custom_call.1} parent=1 // pred_fallthru
      _
    // Predicated region
    $region10: #{tpu_custom_call.1} parent=1 // pred_check
      _
    $region11: #{tpu_custom_call.1} parent=1 // pred_check_branch
      %36 = sbr.rel (0) target = $region13
    $region12: #{tpu_custom_call.1} parent=1 // pred_region
      %s38 = ssub.s32 1024, 1024
      %39 = vsyncadd [#allocation7], %s38
      %s40 = sshll.u32 [#allocation8], 4
      %s41 = int_to_ptr.vmem [resolvable:$true] %s40
      %46 = dma.hbm_to_vmem [thread:$0]  %s2, 1024, %s41, [#allocation7], 64, 64, 4
    $region13: #{tpu_custom_call.1} parent=1 // pred_fallthru
      _
    // Predicated region
    $region14: #{tpu_custom_call.1} parent=1 // pred_check
      _
    $region15: #{tpu_custom_call.1} parent=1 // pred_check_branch
      %48 = sbr.rel (0) target = $region17
    $region16: #{tpu_custom_call.1} parent=1 // pred_region
      %49 = dma.done [#allocation4], 128
    $region17: #{tpu_custom_call.1} parent=1 // pred_fallthru
      _
    // Predicated region
    $region18: #{tpu_custom_call.1} parent=1 // pred_check
      _
    $region19: #{tpu_custom_call.1} parent=1 // pred_check_branch
      %51 = sbr.rel (0) target = $region21
    $region20: #{tpu_custom_call.1} parent=1 // pred_region
      %52 = dma.done [#allocation7], 2048
    $region21: #{tpu_custom_call.1} parent=1 // pred_fallthru
      _
    // Predicated region
    $region22: #{tpu_custom_call.1} parent=1 // pred_check
      _
    $region23: #{tpu_custom_call.1} parent=1 // pred_check_branch
      %54 = sbr.rel (0) target = $region25
    $region24: #{tpu_custom_call.1} parent=1 // pred_region
      %55 = dma.done [#allocation7], 1024
    $region25: #{tpu_custom_call.1} parent=1 // pred_fallthru
      _
    %v57 = vld [vmem:[#allocation3] sm:$0xf]
    %v58 = vld [vmem:[#allocation3 + $0x4] sm:$0xf]
    %v59 = vld [vmem:[#allocation6] sm:$0xf]
    %v60 = vld [vmem:[#allocation6 + $0x4] sm:$0xf]
    %v61 = vld [vmem:[#allocation6 + $0x8] sm:$0xf]
    %v62 = vld [vmem:[#allocation6 + $0xc] sm:$0xf]
    %v63 = vld [vmem:[#allocation6 + $0x10] sm:$0xf]
    %v64 = vld [vmem:[#allocation6 + $0x14] sm:$0xf]
    %v65 = vld [vmem:[#allocation6 + $0x18] sm:$0xf]
    %v66 = vld [vmem:[#allocation6 + $0x1c] sm:$0xf]
    %v67 = vld [vmem:[#allocation6 + $0x20] sm:$0xf]
    %v68 = vld [vmem:[#allocation6 + $0x24] sm:$0xf]
    %v69 = vld [vmem:[#allocation6 + $0x28] sm:$0xf]
    %v70 = vld [vmem:[#allocation6 + $0x2c] sm:$0xf]
    %v71 = vld [vmem:[#allocation6 + $0x30] sm:$0xf]
    %v72 = vld [vmem:[#allocation6 + $0x34] sm:$0xf]
    %v73 = vld [vmem:[#allocation6 + $0x38] sm:$0xf]
    %v74 = vld [vmem:[#allocation6 + $0x3c] sm:$0xf]
    %v75 = vld [vmem:[#allocation6 + $0x40] sm:$0xf]
    %v76 = vld [vmem:[#allocation6 + $0x44] sm:$0xf]
    %v77 = vld [vmem:[#allocation6 + $0x48] sm:$0xf]
    %v78 = vld [vmem:[#allocation6 + $0x4c] sm:$0xf]
    %v79 = vld [vmem:[#allocation6 + $0x50] sm:$0xf]
    %v80 = vld [vmem:[#allocation6 + $0x54] sm:$0xf]
    %v81 = vld [vmem:[#allocation6 + $0x58] sm:$0xf]
    %v82 = vld [vmem:[#allocation6 + $0x5c] sm:$0xf]
    %v83 = vld [vmem:[#allocation6 + $0x60] sm:$0xf]
    %v84 = vld [vmem:[#allocation6 + $0x64] sm:$0xf]
    %v85 = vld [vmem:[#allocation6 + $0x68] sm:$0xf]
    %v86 = vld [vmem:[#allocation6 + $0x6c] sm:$0xf]
    %v87 = vld [vmem:[#allocation6 + $0x70] sm:$0xf]
    %v88 = vld [vmem:[#allocation6 + $0x74] sm:$0xf]
    %v89 = vld [vmem:[#allocation6 + $0x78] sm:$0xf]
    %v90 = vld [vmem:[#allocation6 + $0x7c] sm:$0xf]
    %v93 = vunpack.c.l.b16 %v57
    %v94 = vunpack.c.l.b16 %v58
    %v95 = vpack.c.b16 %v94, %v93
    %v129 = vunpack.c.l.b16 %v59
    %v130 = vunpack.c.l.b16 %v60
    %v131 = vunpack.c.l.b16 %v61
    %v132 = vunpack.c.l.b16 %v62
    %v133 = vunpack.c.l.b16 %v63
    %v134 = vunpack.c.l.b16 %v64
    %v135 = vunpack.c.l.b16 %v65
    %v136 = vunpack.c.l.b16 %v66
    %v137 = vunpack.c.l.b16 %v67
    %v138 = vunpack.c.l.b16 %v68
    %v139 = vunpack.c.l.b16 %v69
    %v140 = vunpack.c.l.b16 %v70
    %v141 = vunpack.c.l.b16 %v71
    %v142 = vunpack.c.l.b16 %v72
    %v143 = vunpack.c.l.b16 %v73
    %v144 = vunpack.c.l.b16 %v74
    %v145 = vunpack.c.l.b16 %v75
    %v146 = vunpack.c.l.b16 %v76
    %v147 = vunpack.c.l.b16 %v77
    %v148 = vunpack.c.l.b16 %v78
    %v149 = vunpack.c.l.b16 %v79
    %v150 = vunpack.c.l.b16 %v80
    %v151 = vunpack.c.l.b16 %v81
    %v152 = vunpack.c.l.b16 %v82
    %v153 = vunpack.c.l.b16 %v83
    %v154 = vunpack.c.l.b16 %v84
    %v155 = vunpack.c.l.b16 %v85
    %v156 = vunpack.c.l.b16 %v86
    %v157 = vunpack.c.l.b16 %v87
    %v158 = vunpack.c.l.b16 %v88
    %v159 = vunpack.c.l.b16 %v89
    %v160 = vunpack.c.l.b16 %v90
    %v161 = vpack.c.b16 %v130, %v129
    %v162 = vpack.c.b16 %v132, %v131
    %v163 = vpack.c.b16 %v134, %v133
    %v164 = vpack.c.b16 %v136, %v135
    %v165 = vpack.c.b16 %v138, %v137
    %v166 = vpack.c.b16 %v140, %v139
    %v167 = vpack.c.b16 %v142, %v141
    %v168 = vpack.c.b16 %v144, %v143
    %v169 = vpack.c.b16 %v146, %v145
    %v170 = vpack.c.b16 %v148, %v147
    %v171 = vpack.c.b16 %v150, %v149
    %v172 = vpack.c.b16 %v152, %v151
    %v173 = vpack.c.b16 %v154, %v153
    %v174 = vpack.c.b16 %v156, %v155
    %v175 = vpack.c.b16 %v158, %v157
    %v176 = vpack.c.b16 %v160, %v159
    %193 = vmatprep.subr.bf16.mxu0 0
    %194 = vmatpush1.bf16.xpose.msra.mxu0 %v161
    %195 = vmatprep.subr.bf16.mxu0 0
    %196 = vmatpush1.bf16.xpose.msra.mxu0 %v162
    %197 = vmatprep.subr.bf16.mxu0 0
    %198 = vmatpush1.bf16.xpose.msra.mxu0 %v163
    %199 = vmatprep.subr.bf16.mxu0 0
    %200 = vmatpush1.bf16.xpose.msra.mxu0 %v164
    %201 = vmatprep.subr.bf16.mxu0 0
    %202 = vmatpush1.bf16.xpose.msra.mxu0 %v165
    %203 = vmatprep.subr.bf16.mxu0 0
    %204 = vmatpush1.bf16.xpose.msra.mxu0 %v166
    %205 = vmatprep.subr.bf16.mxu0 0
    %206 = vmatpush1.bf16.xpose.msra.mxu0 %v167
    %207 = vmatprep.subr.bf16.mxu0 0
    %208 = vmatpush1.bf16.xpose.msra.mxu0 %v168
    %209 = vmatprep.subr.bf16.mxu0 0
    %210 = vmatpush1.bf16.xpose.msra.mxu0 %v169
    %211 = vmatprep.subr.bf16.mxu0 0
    %212 = vmatpush1.bf16.xpose.msra.mxu0 %v170
    %213 = vmatprep.subr.bf16.mxu0 0
    %214 = vmatpush1.bf16.xpose.msra.mxu0 %v171
    %215 = vmatprep.subr.bf16.mxu0 0
    %216 = vmatpush1.bf16.xpose.msra.mxu0 %v172
    %217 = vmatprep.subr.bf16.mxu0 0
    %218 = vmatpush1.bf16.xpose.msra.mxu0 %v173
    %219 = vmatprep.subr.bf16.mxu0 0
    %220 = vmatpush1.bf16.xpose.msra.mxu0 %v174
    %221 = vmatprep.subr.bf16.mxu0 0
    %222 = vmatpush1.bf16.xpose.msra.mxu0 %v175
    %223 = vmatprep.subr.bf16.mxu0 0
    %224 = vmatpush1.bf16.xpose.msra.mxu0 %v176
    %225 = vmatprep.mubr.bf16.mxu0 0
    %226 = vmatmul.mubr.bf16.gmra.mrb[0].mxu0 %v95
    %v227 = vpop.f32.mrb[0].mxu0
    %v228 = vadd.f32 0.0, %v227
    %v229 = vpop.f32.mrb[0].mxu0
    %v230 = vadd.f32 0.0, %v229
    %v231 = vpop.f32.mrb[0].mxu0
    %v232 = vadd.f32 0.0, %v231
    %v233 = vpop.f32.mrb[0].mxu0
    %v234 = vadd.f32 0.0, %v233
    %235 = vdwg.mxu0
    %v236 = vxor.u32 %v228, 2147483648
    %v237 = vxor.u32 %v232, 2147483648
    %v238 = vmul.f32 %v236, 1.442695
    %v239 = vpow.pop %v238
    %v240 = vmul.f32 %v237, 1.442695
    %v241 = vpow.pop %v240
    %v242 = vadd.f32 %v239, 1.0
    %v243 = vadd.f32 %v241, 1.0
    %v244 = vrcp.pop %v242
    %v245 = vmul.f32 1.0, %v244
    %v246 = vrcp.pop %v243
    %v247 = vmul.f32 1.0, %v246
    %v248 = vmul.f32 %v228, %v245
    %v249 = vmul.f32 %v232, %v247
    %v250 = vmul.f32 %v248, %v230
    %v251 = vmul.f32 %v249, %v234
    %v252 = vpack.c.bf16 %v251, %v250
    %v253 = vld [vmem:[#allocation8] sm:$0xf]
    %v254 = vld [vmem:[#allocation8 + $0x4] sm:$0xf]
    %v255 = vld [vmem:[#allocation8 + $0x8] sm:$0xf]
    %v256 = vld [vmem:[#allocation8 + $0xc] sm:$0xf]
    %v257 = vld [vmem:[#allocation8 + $0x10] sm:$0xf]
    %v258 = vld [vmem:[#allocation8 + $0x14] sm:$0xf]
    %v259 = vld [vmem:[#allocation8 + $0x18] sm:$0xf]
    %v260 = vld [vmem:[#allocation8 + $0x1c] sm:$0xf]
    %v261 = vld [vmem:[#allocation8 + $0x20] sm:$0xf]
    %v262 = vld [vmem:[#allocation8 + $0x24] sm:$0xf]
    %v263 = vld [vmem:[#allocation8 + $0x28] sm:$0xf]
    %v264 = vld [vmem:[#allocation8 + $0x2c] sm:$0xf]
    %v265 = vld [vmem:[#allocation8 + $0x30] sm:$0xf]
    %v266 = vld [vmem:[#allocation8 + $0x34] sm:$0xf]
    %v267 = vld [vmem:[#allocation8 + $0x38] sm:$0xf]
    %v268 = vld [vmem:[#allocation8 + $0x3c] sm:$0xf]
    %v285 = vunpack.c.l.b16 %v253
    %v286 = vunpack.c.l.b16 %v254
    %v287 = vunpack.c.l.b16 %v255
    %v288 = vunpack.c.l.b16 %v256
    %v289 = vunpack.c.l.b16 %v257
    %v290 = vunpack.c.l.b16 %v258
    %v291 = vunpack.c.l.b16 %v259
    %v292 = vunpack.c.l.b16 %v260
    %v293 = vunpack.c.l.b16 %v261
    %v294 = vunpack.c.l.b16 %v262
    %v295 = vunpack.c.l.b16 %v263
    %v296 = vunpack.c.l.b16 %v264
    %v297 = vunpack.c.l.b16 %v265
    %v298 = vunpack.c.l.b16 %v266
    %v299 = vunpack.c.l.b16 %v267
    %v300 = vunpack.c.l.b16 %v268
    %v301 = vpack.c.b16 %v286, %v285
    %v302 = vpack.c.b16 %v288, %v287
    %v303 = vpack.c.b16 %v290, %v289
    %v304 = vpack.c.b16 %v292, %v291
    %v305 = vpack.c.b16 %v294, %v293
    %v306 = vpack.c.b16 %v296, %v295
    %v307 = vpack.c.b16 %v298, %v297
    %v308 = vpack.c.b16 %v300, %v299
    %317 = vmatprep.subr.bf16.mxu0 0
    %318 = vmatpush1.bf16.xpose.msra.mxu0 %v301
    %319 = vmatprep.subr.bf16.mxu0 0
    %320 = vmatpush1.bf16.xpose.msra.mxu0 %v302
    %321 = vmatprep.subr.bf16.mxu0 0
    %322 = vmatpush1.bf16.xpose.msra.mxu0 %v303
    %323 = vmatprep.subr.bf16.mxu0 0
    %324 = vmatpush1.bf16.xpose.msra.mxu0 %v304
    %325 = vmatprep.subr.bf16.mxu0 0
    %326 = vmatpush1.bf16.xpose.msra.mxu0 %v305
    %327 = vmatprep.subr.bf16.mxu0 0
    %328 = vmatpush1.bf16.xpose.msra.mxu0 %v306
    %329 = vmatprep.subr.bf16.mxu0 0
    %330 = vmatpush1.bf16.xpose.msra.mxu0 %v307
    %331 = vmatprep.subr.bf16.mxu0 0
    %332 = vmatpush1.bf16.xpose.msra.mxu0 %v308
    %333 = vmatprep.subr.bf16.mxu0 0
    %334 = vmatpush1.bf16.xpose.msra.mxu0 0
    %335 = vmatprep.subr.bf16.mxu0 0
    %336 = vmatpush1.bf16.xpose.msra.mxu0 0
    %337 = vmatprep.subr.bf16.mxu0 0
    %338 = vmatpush1.bf16.xpose.msra.mxu0 0
    %339 = vmatprep.subr.bf16.mxu0 0
    %340 = vmatpush1.bf16.xpose.msra.mxu0 0
    %341 = vmatprep.subr.bf16.mxu0 0
    %342 = vmatpush1.bf16.xpose.msra.mxu0 0
    %343 = vmatprep.subr.bf16.mxu0 0
    %344 = vmatpush1.bf16.xpose.msra.mxu0 0
    %345 = vmatprep.subr.bf16.mxu0 0
    %346 = vmatpush1.bf16.xpose.msra.mxu0 0
    %347 = vmatprep.subr.bf16.mxu0 0
    %348 = vmatpush1.bf16.xpose.msra.mxu0 0
    %349 = vmatprep.mubr.bf16.mxu0 0
    %350 = vmatmul.mubr.bf16.gmra.mrb[0].mxu0 %v252
    %v351 = vpop.f32.mrb[0].mxu0
    %v352 = vadd.f32 0.0, %v351
    %v353 = vpop.f32.mrb[0].mxu0
    %v354 = vpop.f32.mrb[0].mxu0
    %v355 = vadd.f32 0.0, %v354
    %v356 = vpop.f32.mrb[0].mxu0
    %357 = vdwg.mxu0
    %p358 = scmp.eq.s32.totalorder 0, 0
    // Predicated region
    $region26: #{tpu_custom_call.1} parent=1 // pred_check
      %p359 = pneg %p358
    $region27: #{tpu_custom_call.1} parent=1 // pred_check_branch
      %361 = sbr.rel (%p359) target = $region29
    $region28: #{tpu_custom_call.1} parent=1 // pred_region
      %362 = vst [vmem:[#allocation2] sm:$0xff] %v352
      %363 = vst [vmem:[#allocation2 + $0x8] sm:$0xff] %v355
    $region29: #{tpu_custom_call.1} parent=1 // pred_fallthru
      _
    %p364 = scmp.gt.s32.totalorder 0, 0
    // Predicated region
    $region30: #{tpu_custom_call.1} parent=1 // pred_check
      %p365 = pneg %p364
    $region31: #{tpu_custom_call.1} parent=1 // pred_check_branch
      %367 = sbr.rel (%p365) target = $region33
    $region32: #{tpu_custom_call.1} parent=1 // pred_region
      %v368 = vld [vmem:[#allocation2] sm:$0xff]
      %v369 = vld [vmem:[#allocation2 + $0x8] sm:$0xff]
      %v370 = vadd.f32 %v368, %v352
      %v371 = vadd.f32 %v369, %v355
      %372 = vst [vmem:[#allocation2] sm:$0xff] %v370
      %373 = vst [vmem:[#allocation2 + $0x8] sm:$0xff] %v371
    $region33: #{tpu_custom_call.1} parent=1 // pred_fallthru
      _
    // Predicated region
    $region34: #{tpu_custom_call.1} parent=1 // pred_check
      %p374 = pneg %p358
    $region35: #{tpu_custom_call.1} parent=1 // pred_check_branch
      %376 = sbr.rel (%p374) target = $region37
    $region36: #{tpu_custom_call.1} parent=1 // pred_region
      %v377 = vld [vmem:[#allocation2] sm:$0xff]
      %v378 = vld [vmem:[#allocation2 + $0x8] sm:$0xff]
      %379 = vst [vmem:[#allocation9] sm:$0xff] %v377
      %380 = vst [vmem:[#allocation9 + $0x8] sm:$0xff] %v378
    $region37: #{tpu_custom_call.1} parent=1 // pred_fallthru
      _
    // Predicated region
    $region38: #{tpu_custom_call.1} parent=1 // pred_check
      _
    $region39: #{tpu_custom_call.1} parent=1 // pred_check_branch
      %382 = sbr.rel (0) target = $region41
    $region40: #{tpu_custom_call.1} parent=1 // pred_region
      %s384 = ssub.s32 256, 256
      %385 = vsyncadd [#allocation5], %s384
      %s386 = sshll.u32 [#allocation9], 4
      %s387 = int_to_ptr.vmem [resolvable:$true] %s386
      %392 = dma.vmem_to_hbm [thread:$0]  %s387, 256, %s3, [#allocation5], 128, 128, 8
    $region41: #{tpu_custom_call.1} parent=1 // pred_fallthru
      _
    // Predicated region
    $region42: #{tpu_custom_call.1} parent=1 // pred_check
      _
    $region43: #{tpu_custom_call.1} parent=1 // pred_check_branch
      %394 = sbr.rel (0) target = $region45
    $region44: #{tpu_custom_call.1} parent=1 // pred_region
      %395 = dma.done [#allocation5], 256
    $region45: #{tpu_custom_call.1} parent=1 // pred_fallthru
      _
    %396 = vsyncpa [#allocation4], 1
    %397 = vsyncpa [#allocation7], 1
    %398 = vsyncpa [#allocation5], 1

</llo_original>
